<compile_context>
chip_gen: v7x
topology: tpu7x:2x2x1
jax: 0.10.0
libtpu: 0.0.40
codegen_flags: <defaults>
</compile_context>

<pallas_src>
import functools

import jax
import jax.numpy as jnp
from jax.experimental import pallas as pl
from jax.experimental.pallas import tpu as pltpu

LANES = 128           # lane width -> lane-dense output padding
SUBLANE_BF16 = 16     # bf16 packs 16 rows per sublane group
DEFAULT_TILE_B = 512  # big batch tile: per-step overhead ~0.35us, x tile is tiny


def _round_up(n, m):
    return ((n + m - 1) // m) * m


def dqn_kernel(x_ref, w1_ref, b1_ref, w2_ref, b2_ref, w3_ref, b3_ref, o_ref):
    # Layer 1: bf16 MXU matmul, f32 accumulate; bias + ReLU in f32 (VPU-native on v5e).
    h1 = jnp.dot(x_ref[...], w1_ref[...], preferred_element_type=jnp.float32)
    h1 = jnp.maximum(h1 + b1_ref[...], 0.0)
    # Layer 2.
    h2 = jnp.dot(h1.astype(jnp.bfloat16), w2_ref[...],
                 preferred_element_type=jnp.float32)
    h2 = jnp.maximum(h2 + b2_ref[...], 0.0)
    # Layer 3 (lane-padded to 128 output columns), no activation.
    out = jnp.dot(h2.astype(jnp.bfloat16), w3_ref[...],
                  preferred_element_type=jnp.float32)
    o_ref[...] = (out + b3_ref[...]).astype(o_ref.dtype)


@functools.partial(jax.jit, static_argnames=("tile_b",))
def dqn_forward(x, params, tile_b=DEFAULT_TILE_B):
    w1, b1, w2, b2, w3, b3 = params
    batch, input_dim = x.shape
    action_dim = w3.shape[1]

    # --- lane-dense output: pad layer-3 output features to full 128-lane vregs ---
    padded_actions = _round_up(action_dim, LANES)
    w3p = jnp.zeros((w3.shape[0], padded_actions), w3.dtype).at[:, :action_dim].set(w3)
    b3p = jnp.zeros((1, padded_actions), b3.dtype).at[:, :action_dim].set(b3)

    # --- batch tiling (multiple of 16 for bf16 sublane packing) ---
    tb = min(tile_b, _round_up(batch, SUBLANE_BF16))
    tb = _round_up(tb, SUBLANE_BF16)
    padded_batch = _round_up(batch, tb)
    if padded_batch != batch:
        x = jnp.pad(x, ((0, padded_batch - batch), (0, 0)))

    # --- bf16 for the mem-bound x stream and MXU-native matmuls; biases stay f32 ---
    x_bf = x.astype(jnp.bfloat16)
    w1_bf = w1.astype(jnp.bfloat16)
    w2_bf = w2.astype(jnp.bfloat16)
    w3_bf = w3p.astype(jnp.bfloat16)

    grid = (padded_batch // tb,)

    out = pl.pallas_call(
        dqn_kernel,
        out_shape=jax.ShapeDtypeStruct((padded_batch, padded_actions), jnp.float32),
        grid=grid,
        in_specs=[
            # x: tiled along batch, auto double-buffered per grid step.
            pl.BlockSpec((tb, input_dim), lambda i: (i, 0)),
            # Weights & biases: full-array blocks, constant index_map -> VMEM-resident.
            pl.BlockSpec(w1_bf.shape, lambda i: (0, 0)),
            pl.BlockSpec(b1.shape, lambda i: (0, 0)),
            pl.BlockSpec(w2_bf.shape, lambda i: (0, 0)),
            pl.BlockSpec(b2.shape, lambda i: (0, 0)),
            pl.BlockSpec(w3_bf.shape, lambda i: (0, 0)),
            pl.BlockSpec(b3p.shape, lambda i: (0, 0)),
        ],
        out_specs=pl.BlockSpec((tb, padded_actions), lambda i: (i, 0)),
        compiler_params=pltpu.CompilerParams(
            dimension_semantics=("parallel",)),
    )(x_bf, w1_bf, b1, w2_bf, b2, w3_bf, b3p)

    # Slice back to the logical shape (drop batch padding + lane padding).
    return out[:batch, :action_dim]


def init_params(key, input_dim, action_dim):
    # PyTorch-style uniform(-1/sqrt(fan_in), 1/sqrt(fan_in)) init.
    def linear(k, fan_in, fan_out):
        kw, kb = jax.random.split(k)
        bound = 1.0 / jnp.sqrt(fan_in)
        w = jax.random.uniform(kw, (fan_in, fan_out), jnp.float32, -bound, bound)
        b = jax.random.uniform(kb, (1, fan_out), jnp.float32, -bound, bound)
        return w, b

    k1, k2, k3 = jax.random.split(key, 3)
    w1, b1 = linear(k1, input_dim, 64)
    w2, b2 = linear(k2, 64, 32)
    w3, b3 = linear(k3, 32, action_dim)
    return (w1, b1, w2, b2, w3, b3)


def dqn_reference_f32(x, params):
    # Full-f32 PyTorch-semantics reference.
    w1, b1, w2, b2, w3, b3 = params
    h1 = jnp.maximum(x @ w1 + b1, 0.0)
    h2 = jnp.maximum(h1 @ w2 + b2, 0.0)
    return h2 @ w3 + b3


def dqn_reference_bf16(x, params):
    # Mirrors the kernel's bf16-matmul / f32-accumulate numerics.
    w1, b1, w2, b2, w3, b3 = params
    bf = jnp.bfloat16
    h1 = jnp.dot(x.astype(bf), w1.astype(bf), preferred_element_type=jnp.float32)
    h1 = jnp.maximum(h1 + b1, 0.0)
    h2 = jnp.dot(h1.astype(bf), w2.astype(bf), preferred_element_type=jnp.float32)
    h2 = jnp.maximum(h2 + b2, 0.0)
    out = jnp.dot(h2.astype(bf), w3.astype(bf), preferred_element_type=jnp.float32)
    return out + b3


if __name__ == "__main__":
    key = jax.random.PRNGKey(0)
    kx, kp = jax.random.split(key)

    batch, input_dim, action_dim = 8, 16, 3
    x = jax.random.normal(kx, (batch, input_dim), jnp.float32)
    params = init_params(kp, input_dim, action_dim)

    out = dqn_forward(x, params)
    jax.block_until_ready(out)
    assert out.shape == (batch, action_dim)

    # Tight check against a reference with matching bf16-matmul numerics.
    ref_bf16 = dqn_reference_bf16(x, params)
    assert jnp.allclose(out, ref_bf16, atol=1e-3, rtol=1e-3), "bf16-ref mismatch"

    # Loose check against the full-f32 PyTorch-semantics reference.
    ref_f32 = dqn_reference_f32(x, params)
    assert jnp.allclose(out, ref_f32, atol=5e-2, rtol=5e-2), "f32-ref mismatch"

    print("KERNEL_OK")
</pallas_src>

<mosaic_0001>
module attributes {stable_mosaic.version = 11 : i64} {
  func.func @dqn_kernel(%arg0: i32, %arg1: memref<16x16xbf16, #tpu.memory_space<vmem>>, %arg2: memref<16x64xbf16, #tpu.memory_space<vmem>>, %arg3: memref<1x64xf32, #tpu.memory_space<vmem>>, %arg4: memref<64x32xbf16, #tpu.memory_space<vmem>>, %arg5: memref<1x32xf32, #tpu.memory_space<vmem>>, %arg6: memref<32x128xbf16, #tpu.memory_space<vmem>>, %arg7: memref<1x128xf32, #tpu.memory_space<vmem>>, %arg8: memref<16x128xf32, #tpu.memory_space<vmem>>) attributes {dimension_semantics = [#tpu.dimension_semantics<parallel>], iteration_bounds = array<i64: 1>, scalar_prefetch = 0 : i64, scratch_operands = 0 : i64, tpu.core_type = #tpu.core_type<tc>, window_params = [{transform_indices = @transform_0, window_bounds = array<i64: 16, 16>}, {pipeline_mode = #tpu.pipeline_mode<synchronous>, transform_indices = @transform_1, window_bounds = array<i64: 16, 64>}, {pipeline_mode = #tpu.pipeline_mode<synchronous>, transform_indices = @transform_2, window_bounds = array<i64: 1, 64>}, {pipeline_mode = #tpu.pipeline_mode<synchronous>, transform_indices = @transform_3, window_bounds = array<i64: 64, 32>}, {pipeline_mode = #tpu.pipeline_mode<synchronous>, transform_indices = @transform_4, window_bounds = array<i64: 1, 32>}, {pipeline_mode = #tpu.pipeline_mode<synchronous>, transform_indices = @transform_5, window_bounds = array<i64: 32, 128>}, {pipeline_mode = #tpu.pipeline_mode<synchronous>, transform_indices = @transform_6, window_bounds = array<i64: 1, 128>}, {transform_indices = @transform_7, window_bounds = array<i64: 16, 128>}]} {
    %c0 = arith.constant 0 : index
    %c0_0 = arith.constant 0 : index
    %0 = vector.load %arg1[%c0, %c0_0] : memref<16x16xbf16, #tpu.memory_space<vmem>>, vector<16x16xbf16>
    %c0_1 = arith.constant 0 : index
    %c0_2 = arith.constant 0 : index
    %1 = vector.load %arg2[%c0_1, %c0_2] : memref<16x64xbf16, #tpu.memory_space<vmem>>, vector<16x64xbf16>
    %cst = arith.constant dense<0.000000e+00> : vector<16x64xf32>
    %2 = tpu.matmul %0, %1, %cst {dimension_numbers = #tpu.dot_dimension_numbers<[1], [0], [0], [1], [0, 0, 1, 1], [], []>} : vector<16x16xbf16>, vector<16x64xbf16>, vector<16x64xf32> -> vector<16x64xf32>
    %c0_3 = arith.constant 0 : index
    %c0_4 = arith.constant 0 : index
    %3 = vector.load %arg3[%c0_3, %c0_4] : memref<1x64xf32, #tpu.memory_space<vmem>>, vector<1x64xf32>
    %4 = vector.broadcast %3 : vector<1x64xf32> to vector<16x64xf32>
    %5 = arith.addf %2, %4 : vector<16x64xf32>
    %cst_5 = arith.constant 0.000000e+00 : f32
    %6 = vector.broadcast %cst_5 : f32 to vector<16x64xf32>
    %7 = arith.maximumf %5, %6 : vector<16x64xf32>
    %8 = arith.truncf %7 : vector<16x64xf32> to vector<16x64xbf16>
    %c0_6 = arith.constant 0 : index
    %c0_7 = arith.constant 0 : index
    %9 = vector.load %arg4[%c0_6, %c0_7] : memref<64x32xbf16, #tpu.memory_space<vmem>>, vector<64x32xbf16>
    %cst_8 = arith.constant dense<0.000000e+00> : vector<16x32xf32>
    %10 = tpu.matmul %8, %9, %cst_8 {dimension_numbers = #tpu.dot_dimension_numbers<[1], [0], [0], [1], [0, 0, 1, 1], [], []>} : vector<16x64xbf16>, vector<64x32xbf16>, vector<16x32xf32> -> vector<16x32xf32>
    %c0_9 = arith.constant 0 : index
    %c0_10 = arith.constant 0 : index
    %11 = vector.load %arg5[%c0_9, %c0_10] : memref<1x32xf32, #tpu.memory_space<vmem>>, vector<1x32xf32>
    %12 = vector.broadcast %11 : vector<1x32xf32> to vector<16x32xf32>
    %13 = arith.addf %10, %12 : vector<16x32xf32>
    %cst_11 = arith.constant 0.000000e+00 : f32
    %14 = vector.broadcast %cst_11 : f32 to vector<16x32xf32>
    %15 = arith.maximumf %13, %14 : vector<16x32xf32>
    %16 = arith.truncf %15 : vector<16x32xf32> to vector<16x32xbf16>
    %c0_12 = arith.constant 0 : index
    %c0_13 = arith.constant 0 : index
    %17 = vector.load %arg6[%c0_12, %c0_13] : memref<32x128xbf16, #tpu.memory_space<vmem>>, vector<32x128xbf16>
    %cst_14 = arith.constant dense<0.000000e+00> : vector<16x128xf32>
    %18 = tpu.matmul %16, %17, %cst_14 {dimension_numbers = #tpu.dot_dimension_numbers<[1], [0], [0], [1], [0, 0, 1, 1], [], []>} : vector<16x32xbf16>, vector<32x128xbf16>, vector<16x128xf32> -> vector<16x128xf32>
    %c0_15 = arith.constant 0 : index
    %c0_16 = arith.constant 0 : index
    %19 = vector.load %arg7[%c0_15, %c0_16] : memref<1x128xf32, #tpu.memory_space<vmem>>, vector<1x128xf32>
    %20 = vector.broadcast %19 : vector<1x128xf32> to vector<16x128xf32>
    %21 = arith.addf %18, %20 : vector<16x128xf32>
    %c0_17 = arith.constant 0 : index
    %c0_18 = arith.constant 0 : index
    %22 = vector.load %arg8[%c0_17, %c0_18] : memref<16x128xf32, #tpu.memory_space<vmem>>, vector<16x128xf32>
    tpu.vector_store %arg8[%c0_17, %c0_18], %21 {strides = array<i32>} : memref<16x128xf32, #tpu.memory_space<vmem>>, vector<16x128xf32>,
    return
  }
  func.func @transform_0(%arg0: i32) -> (i32, i32) {
    %c0_i32 = arith.constant 0 : i32
    %c0_i32_0 = arith.constant 0 : i32
    return %arg0, %c0_i32 : i32, i32
  }
  func.func @transform_1(%arg0: i32) -> (i32, i32) {
    %c0_i32 = arith.constant 0 : i32
    %c0_i32_0 = arith.constant 0 : i32
    %c0_i32_1 = arith.constant 0 : i32
    return %c0_i32, %c0_i32_0 : i32, i32
  }
  func.func @transform_2(%arg0: i32) -> (i32, i32) {
    %c0_i32 = arith.constant 0 : i32
    %c0_i32_0 = arith.constant 0 : i32
    %c0_i32_1 = arith.constant 0 : i32
    return %c0_i32, %c0_i32_0 : i32, i32
  }
  func.func @transform_3(%arg0: i32) -> (i32, i32) {
    %c0_i32 = arith.constant 0 : i32
    %c0_i32_0 = arith.constant 0 : i32
    %c0_i32_1 = arith.constant 0 : i32
    return %c0_i32, %c0_i32_0 : i32, i32
  }
  func.func @transform_4(%arg0: i32) -> (i32, i32) {
    %c0_i32 = arith.constant 0 : i32
    %c0_i32_0 = arith.constant 0 : i32
    %c0_i32_1 = arith.constant 0 : i32
    return %c0_i32, %c0_i32_0 : i32, i32
  }
  func.func @transform_5(%arg0: i32) -> (i32, i32) {
    %c0_i32 = arith.constant 0 : i32
    %c0_i32_0 = arith.constant 0 : i32
    %c0_i32_1 = arith.constant 0 : i32
    return %c0_i32, %c0_i32_0 : i32, i32
  }
  func.func @transform_6(%arg0: i32) -> (i32, i32) {
    %c0_i32 = arith.constant 0 : i32
    %c0_i32_0 = arith.constant 0 : i32
    %c0_i32_1 = arith.constant 0 : i32
    return %c0_i32, %c0_i32_0 : i32, i32
  }
  func.func @transform_7(%arg0: i32) -> (i32, i32) {
    %c0_i32 = arith.constant 0 : i32
    %c0_i32_0 = arith.constant 0 : i32
    return %arg0, %c0_i32 : i32, i32
  }
}

</mosaic_0001>

<llo_original>
// kernel: dqn_forward.1
$region0: #{dqn_forward.1}
  #allocation0 [shape = 'u32[]', space=smem, size = 0x4, offset = 0x4, fixed_abs, tag = 'smem constant byte address 0x4 - core index']
  #allocation1 [shape = 'u32[144,128]{1,0:T(1,128)}', space=vmem, size = 0x12000, scoped, tag = 'internal scratch']
  %s0 = inlined_call_operand.vmem [shape: bf16[16,16], index: 0, kind: input, shape index: {}]
  %s1 = inlined_call_operand.vmem [shape: bf16[16,64], index: 1, kind: input, shape index: {}]
  %s2 = inlined_call_operand.vmem [shape: f32[1,64], index: 2, kind: input, shape index: {}]
  %s3 = inlined_call_operand.vmem [shape: bf16[64,32], index: 3, kind: input, shape index: {}]
  %s4 = inlined_call_operand.vmem [shape: f32[1,32], index: 4, kind: input, shape index: {}]
  %s5 = inlined_call_operand.vmem [shape: bf16[32,128], index: 5, kind: input, shape index: {}]
  %s6 = inlined_call_operand.vmem [shape: f32[1,128], index: 6, kind: input, shape index: {}]
  %s7 = inlined_call_operand.vmem [shape: f32[16,128], index: 7, kind: output, shape index: {}]
  %s8 = sld [smem:[#allocation0]]
  $region38: #{dqn_forward.1} parent=0
    _
  %s10 = ssub.s32 1, %s8
  %s11 = scalar_select 0, %s10, %s8
  // Predicated region
  $region2: #{dqn_forward.1} parent=0 // pred_check
    _
  $region3: #{dqn_forward.1} parent=0 // pred_check_branch
    %13 = sbr.rel (0) target = $region5
  $region4: #{dqn_forward.1} parent=0 // pred_region
    _
  $region5: #{dqn_forward.1} parent=0 // pred_fallthru
    _
  // Predicated region
  $region6: #{dqn_forward.1} parent=0 // pred_check
    _
  $region7: #{dqn_forward.1} parent=0 // pred_check_branch
    %15 = sbr.rel (0) target = $region9
  $region8: #{dqn_forward.1} parent=0 // pred_region
    _
  $region9: #{dqn_forward.1} parent=0 // pred_fallthru
    _
  // Predicated region
  $region10: #{dqn_forward.1} parent=0 // pred_check
    _
  $region11: #{dqn_forward.1} parent=0 // pred_check_branch
    %17 = sbr.rel (0) target = $region13
  $region12: #{dqn_forward.1} parent=0 // pred_region
    _
  $region13: #{dqn_forward.1} parent=0 // pred_fallthru
    _
  // Predicated region
  $region14: #{dqn_forward.1} parent=0 // pred_check
    _
  $region15: #{dqn_forward.1} parent=0 // pred_check_branch
    %19 = sbr.rel (0) target = $region17
  $region16: #{dqn_forward.1} parent=0 // pred_region
    _
  $region17: #{dqn_forward.1} parent=0 // pred_fallthru
    _
  // Predicated region
  $region18: #{dqn_forward.1} parent=0 // pred_check
    _
  $region19: #{dqn_forward.1} parent=0 // pred_check_branch
    %21 = sbr.rel (0) target = $region21
  $region20: #{dqn_forward.1} parent=0 // pred_region
    _
  $region21: #{dqn_forward.1} parent=0 // pred_fallthru
    _
  // Predicated region
  $region22: #{dqn_forward.1} parent=0 // pred_check
    _
  $region23: #{dqn_forward.1} parent=0 // pred_check_branch
    %23 = sbr.rel (0) target = $region25
  $region24: #{dqn_forward.1} parent=0 // pred_region
    _
  $region25: #{dqn_forward.1} parent=0 // pred_fallthru
    _
  // Predicated region
  $region26: #{dqn_forward.1} parent=0 // pred_check
    _
  $region27: #{dqn_forward.1} parent=0 // pred_check_branch
    %25 = sbr.rel (0) target = $region29
  $region28: #{dqn_forward.1} parent=0 // pred_region
    _
  $region29: #{dqn_forward.1} parent=0 // pred_fallthru
    _
  %v27 = vld [vmem:[%s0] sm:$0xf]
  %v28 = vld [vmem:[%s0 + $0x4] sm:$0xf]
  %v29 = vld [vmem:[%s1] sm:$0xf]
  %v30 = vld [vmem:[%s1 + $0x4] sm:$0xf]
  %v31 = vld [vmem:[%s2] sm:$0x1]
  %v33 = vlaneseq
  %v34 = vshrl.u32 %v33, 7
  %v35 = vsub.s32 0, %v34
  %v36 = vrot.slane %v31, %v35
  %v40 = vunpack.c.l.b16 %v27
  %v41 = vunpack.c.l.b16 %v28
  %v42 = vpack.c.b16 %v41, %v40
  %v45 = vunpack.c.l.b16 %v29
  %v46 = vunpack.c.l.b16 %v30
  %v47 = vpack.c.b16 %v46, %v45
  %vm49 = vcmask 130048
  %v51 = vsel %vm49, %v42, 0
  %53 = vmatprep.subr.bf16.mxu0 0
  %54 = vmatpush1.bf16.msra.mxu0 %v47
  %55 = vmatprep.subr.bf16.mxu0 0
  %56 = vmatpush1.bf16.msra.mxu0 0
  %57 = vmatprep.subr.bf16.mxu0 0
  %58 = vmatpush1.bf16.msra.mxu0 0
  %59 = vmatprep.subr.bf16.mxu0 0
  %60 = vmatpush1.bf16.msra.mxu0 0
  %61 = vmatprep.subr.bf16.mxu0 0
  %62 = vmatpush1.bf16.msra.mxu0 0
  %63 = vmatprep.subr.bf16.mxu0 0
  %64 = vmatpush1.bf16.msra.mxu0 0
  %65 = vmatprep.subr.bf16.mxu0 0
  %66 = vmatpush1.bf16.msra.mxu0 0
  %67 = vmatprep.subr.bf16.mxu0 0
  %68 = vmatpush1.bf16.msra.mxu0 0
  %69 = vmatprep.subr.bf16.mxu0 0
  %70 = vmatpush1.bf16.msra.mxu0 0
  %71 = vmatprep.subr.bf16.mxu0 0
  %72 = vmatpush1.bf16.msra.mxu0 0
  %73 = vmatprep.subr.bf16.mxu0 0
  %74 = vmatpush1.bf16.msra.mxu0 0
  %75 = vmatprep.subr.bf16.mxu0 0
  %76 = vmatpush1.bf16.msra.mxu0 0
  %77 = vmatprep.subr.bf16.mxu0 0
  %78 = vmatpush1.bf16.msra.mxu0 0
  %79 = vmatprep.subr.bf16.mxu0 0
  %80 = vmatpush1.bf16.msra.mxu0 0
  %81 = vmatprep.subr.bf16.mxu0 0
  %82 = vmatpush1.bf16.msra.mxu0 0
  %83 = vmatprep.subr.bf16.mxu0 0
  %84 = vmatpush1.bf16.msra.mxu0 0
  %85 = vmatprep.mubr.bf16.mxu0 0
  %86 = vmatmul.mubr.bf16.gmra.mrb[0].mxu0 %v51
  %v87 = vpop.f32.mrb[0].mxu0
  %v88 = vadd.f32 %v36, %v87
  %v89 = vpop.f32.mrb[0].mxu0
  %v90 = vpop.f32.mrb[0].mxu0
  %v91 = vadd.f32 %v36, %v90
  %v92 = vpop.f32.mrb[0].mxu0
  %93 = vdwg.mxu0
  %v94 = vmax.f32 %v88, 0.0
  %v95 = vmax.f32 %v91, 0.0
  %v96 = vpack.c.bf16 %v95, %v94
  %v97 = vld [vmem:[%s3] sm:$0xf]
  %v98 = vld [vmem:[%s3 + $0x4] sm:$0xf]
  %v99 = vld [vmem:[%s3 + $0x8] sm:$0xf]
  %v100 = vld [vmem:[%s3 + $0xc] sm:$0xf]
  %v101 = vld [vmem:[%s3 + $0x10] sm:$0xf]
  %v102 = vld [vmem:[%s3 + $0x14] sm:$0xf]
  %v103 = vld [vmem:[%s3 + $0x18] sm:$0xf]
  %v104 = vld [vmem:[%s3 + $0x1c] sm:$0xf]
  %v105 = vld [vmem:[%s4] sm:$0x1]
  %v107 = vlaneseq
  %v108 = vshrl.u32 %v107, 7
  %v109 = vsub.s32 0, %v108
  %v110 = vrot.slane %v105, %v109
  %v120 = vunpack.c.l.b16 %v97
  %v121 = vunpack.c.l.b16 %v98
  %v122 = vunpack.c.l.b16 %v99
  %v123 = vunpack.c.l.b16 %v100
  %v124 = vunpack.c.l.b16 %v101
  %v125 = vunpack.c.l.b16 %v102
  %v126 = vunpack.c.l.b16 %v103
  %v127 = vunpack.c.l.b16 %v104
  %v128 = vpack.c.b16 %v121, %v120
  %v129 = vpack.c.b16 %v123, %v122
  %v130 = vpack.c.b16 %v125, %v124
  %v131 = vpack.c.b16 %v127, %v126
  %vm136 = vcmask 523264
  %v138 = vsel %vm136, %v96, 0
  %140 = vmatprep.subr.bf16.mxu0 0
  %141 = vmatpush1.bf16.msra.mxu0 %v128
  %142 = vmatprep.subr.bf16.mxu0 0
  %143 = vmatpush1.bf16.msra.mxu0 %v129
  %144 = vmatprep.subr.bf16.mxu0 0
  %145 = vmatpush1.bf16.msra.mxu0 %v130
  %146 = vmatprep.subr.bf16.mxu0 0
  %147 = vmatpush1.bf16.msra.mxu0 %v131
  %148 = vmatprep.subr.bf16.mxu0 0
  %149 = vmatpush1.bf16.msra.mxu0 0
  %150 = vmatprep.subr.bf16.mxu0 0
  %151 = vmatpush1.bf16.msra.mxu0 0
  %152 = vmatprep.subr.bf16.mxu0 0
  %153 = vmatpush1.bf16.msra.mxu0 0
  %154 = vmatprep.subr.bf16.mxu0 0
  %155 = vmatpush1.bf16.msra.mxu0 0
  %156 = vmatprep.subr.bf16.mxu0 0
  %157 = vmatpush1.bf16.msra.mxu0 0
  %158 = vmatprep.subr.bf16.mxu0 0
  %159 = vmatpush1.bf16.msra.mxu0 0
  %160 = vmatprep.subr.bf16.mxu0 0
  %161 = vmatpush1.bf16.msra.mxu0 0
  %162 = vmatprep.subr.bf16.mxu0 0
  %163 = vmatpush1.bf16.msra.mxu0 0
  %164 = vmatprep.subr.bf16.mxu0 0
  %165 = vmatpush1.bf16.msra.mxu0 0
  %166 = vmatprep.subr.bf16.mxu0 0
  %167 = vmatpush1.bf16.msra.mxu0 0
  %168 = vmatprep.subr.bf16.mxu0 0
  %169 = vmatpush1.bf16.msra.mxu0 0
  %170 = vmatprep.subr.bf16.mxu0 0
  %171 = vmatpush1.bf16.msra.mxu0 0
  %172 = vmatprep.mubr.bf16.mxu0 0
  %173 = vmatmul.mubr.bf16.gmra.mrb[0].mxu0 %v138
  %v174 = vpop.f32.mrb[0].mxu0
  %v175 = vadd.f32 %v110, %v174
  %v176 = vpop.f32.mrb[0].mxu0
  %v177 = vpop.f32.mrb[0].mxu0
  %v178 = vadd.f32 %v110, %v177
  %v179 = vpop.f32.mrb[0].mxu0
  %180 = vdwg.mxu0
  %v181 = vmax.f32 %v175, 0.0
  %v182 = vmax.f32 %v178, 0.0
  %v183 = vpack.c.bf16 %v182, %v181
  %v184 = vld [vmem:[%s5] sm:$0xf]
  %v185 = vld [vmem:[%s5 + $0x4] sm:$0xf]
  %v186 = vld [vmem:[%s5 + $0x8] sm:$0xf]
  %v187 = vld [vmem:[%s5 + $0xc] sm:$0xf]
  %v188 = vld [vmem:[%s6] sm:$0x1]
  %v190 = vlaneseq
  %v191 = vshrl.u32 %v190, 7
  %v192 = vsub.s32 0, %v191
  %v193 = vrot.slane %v188, %v192
  %v199 = vunpack.c.l.b16 %v184
  %v200 = vunpack.c.l.b16 %v185
  %v201 = vunpack.c.l.b16 %v186
  %v202 = vunpack.c.l.b16 %v187
  %v203 = vpack.c.b16 %v200, %v199
  %v204 = vpack.c.b16 %v202, %v201
  %vm207 = vcmask 261120
  %v209 = vsel %vm207, %v183, 0
  %211 = vmatprep.subr.bf16.mxu0 0
  %212 = vmatpush1.bf16.msra.mxu0 %v203
  %213 = vmatprep.subr.bf16.mxu0 0
  %214 = vmatpush1.bf16.msra.mxu0 %v204
  %215 = vmatprep.subr.bf16.mxu0 0
  %216 = vmatpush1.bf16.msra.mxu0 0
  %217 = vmatprep.subr.bf16.mxu0 0
  %218 = vmatpush1.bf16.msra.mxu0 0
  %219 = vmatprep.subr.bf16.mxu0 0
  %220 = vmatpush1.bf16.msra.mxu0 0
  %221 = vmatprep.subr.bf16.mxu0 0
  %222 = vmatpush1.bf16.msra.mxu0 0
  %223 = vmatprep.subr.bf16.mxu0 0
  %224 = vmatpush1.bf16.msra.mxu0 0
  %225 = vmatprep.subr.bf16.mxu0 0
  %226 = vmatpush1.bf16.msra.mxu0 0
  %227 = vmatprep.subr.bf16.mxu0 0
  %228 = vmatpush1.bf16.msra.mxu0 0
  %229 = vmatprep.subr.bf16.mxu0 0
  %230 = vmatpush1.bf16.msra.mxu0 0
  %231 = vmatprep.subr.bf16.mxu0 0
  %232 = vmatpush1.bf16.msra.mxu0 0
  %233 = vmatprep.subr.bf16.mxu0 0
  %234 = vmatpush1.bf16.msra.mxu0 0
  %235 = vmatprep.subr.bf16.mxu0 0
  %236 = vmatpush1.bf16.msra.mxu0 0
  %237 = vmatprep.subr.bf16.mxu0 0
  %238 = vmatpush1.bf16.msra.mxu0 0
  %239 = vmatprep.subr.bf16.mxu0 0
  %240 = vmatpush1.bf16.msra.mxu0 0
  %241 = vmatprep.subr.bf16.mxu0 0
  %242 = vmatpush1.bf16.msra.mxu0 0
  %243 = vmatprep.mubr.bf16.mxu0 0
  %244 = vmatmul.mubr.bf16.gmra.mrb[0].mxu0 %v209
  %v245 = vpop.f32.mrb[0].mxu0
  %v246 = vadd.f32 %v193, %v245
  %v247 = vpop.f32.mrb[0].mxu0
  %v248 = vpop.f32.mrb[0].mxu0
  %v249 = vadd.f32 %v193, %v248
  %v250 = vpop.f32.mrb[0].mxu0
  %251 = vdwg.mxu0
  %252 = vst [vmem:[%s7] sm:$0xff] %v246
  %253 = vst [vmem:[%s7 + $0x8] sm:$0xff] %v249
  // Predicated region
  $region30: #{dqn_forward.1} parent=0 // pred_check
    _
  $region31: #{dqn_forward.1} parent=0 // pred_check_branch
    %255 = sbr.rel (0) target = $region33
  $region32: #{dqn_forward.1} parent=0 // pred_region
    _
  $region33: #{dqn_forward.1} parent=0 // pred_fallthru
    _
  // Predicated region
  $region34: #{dqn_forward.1} parent=0 // pred_check
    _
  $region35: #{dqn_forward.1} parent=0 // pred_check_branch
    %257 = sbr.rel (0) target = $region37
  $region36: #{dqn_forward.1} parent=0 // pred_region
    _
  $region37: #{dqn_forward.1} parent=0 // pred_fallthru
    _

</llo_original>
